<compile_context>
chip_gen: v7x
topology: tpu7x:2x2x1
jax: 0.10.0
libtpu: 0.0.40
codegen_flags: <defaults>
</compile_context>

<pallas_src>
import functools

import jax
import jax.numpy as jnp
from jax.experimental import pallas as pl
from jax.experimental.pallas import tpu as pltpu


def _downsample_kernel(x_ref, w_ref, scale_ref, shift_ref, o_ref, acc_ref):
    # x_ref:     (1, tile_k, tile_m)  patch columns for one image/spatial tile
    # w_ref:     (Cout, tile_k)       conv weight block (input dtype)
    # scale_ref: (Cout, 1)  f32       gamma / sqrt(var + eps)
    # shift_ref: (Cout, 1)  f32       (conv_b - mean) * scale + beta
    # o_ref:     (1, Cout, tile_m)    lane-dense output tile (maps to NCHW)
    # acc_ref:   (Cout, tile_m) f32   K-reduction accumulator (VMEM scratch)
    k = pl.program_id(2)

    @pl.when(k == 0)
    def _init():
        acc_ref[...] = jnp.zeros_like(acc_ref)

    acc_ref[...] += jnp.dot(w_ref[...], x_ref[0],
                            preferred_element_type=jnp.float32)

    @pl.when(k == pl.num_programs(2) - 1)
    def _finish():
        y = acc_ref[...] * scale_ref[...] + shift_ref[...]   # f32 epilogue
        o_ref[0] = jnp.maximum(y, 0.0).astype(o_ref.dtype)


def _round_up(x, m):
    return (x + m - 1) // m * m


def _vmem_budget_bytes():
    """Generation-aware VMEM budget: <= 3/4 of physical VMEM, capped at 96 MiB.

    v5e/v6e (128 MiB) -> 96 MiB; v7x (64 MiB) -> 48 MiB.  Falls back to the
    v7x-safe floor if the hardware query is unavailable.
    """
    try:
        cap = pltpu.get_tpu_info().vmem_capacity_bytes
    except Exception:
        cap = 64 * 1024 * 1024
    return min(cap * 3 // 4, 96 * 1024 * 1024)


def _plan_tiles(K, Mn_pad, Cout, itemsize, budget, n_batch):
    """Bytes-based tile planning.  Returns (tile_k, tile_m)."""
    target_x_tile = 8 * 1024 * 1024        # upper end of the 2-8 MiB sweet spot

    # ---- tile_k: keep full K unless (weight + minimal x tile) blow budget --
    def k_cost(tk):
        return 2 * Cout * tk * itemsize + 2 * tk * 128 * itemsize

    if k_cost(K) <= budget // 4:
        tile_k = K
    else:
        tile_k = None
        for cand in range(128, K, 128):
            if K % cand == 0 and k_cost(cand) <= budget // 4:
                tile_k = cand
        if tile_k is None:
            # TODO(synk): pad K up to a 128-multiple when it has no nice
            # divisor instead of falling back to an untiled K.
            tile_k = K

    # ---- tile_m: largest 128-multiple divisor of Mn_pad within budget ------
    def m_cost(tm):
        return (2 * tile_k * tm * itemsize        # x tile, double buffered
                + 2 * Cout * tm * itemsize        # out tile, double buffered
                + Cout * tm * 4                   # f32 accumulator scratch
                + 2 * Cout * tile_k * itemsize)   # weight block, double buffered

    tile_m = 128
    for tm in range(128, Mn_pad + 1, 128):
        if Mn_pad % tm:
            continue
        if tile_k * tm * itemsize > target_x_tile:
            continue
        if m_cost(tm) > budget:
            continue
        tile_m = tm

    # ---- make sure both v7x TensorCores get at least one grid step ---------
    if n_batch * (Mn_pad // tile_m) < 2 and Mn_pad >= 256:
        half = 128
        for tm in range(128, Mn_pad // 2 + 1, 128):
            if Mn_pad % tm == 0:
                half = tm
        tile_m = half

    return tile_k, tile_m


@functools.partial(jax.jit, static_argnames=("scale_factor",))
def downsample_x(x, conv_w, conv_b, bn_gamma, bn_beta, bn_mean, bn_var,
                 scale_factor=2, eps=1e-5):
    """x: (N, Cin, H, W) NCHW.  Returns (N, Cout, H//s, W//s) NCHW."""
    s = scale_factor
    N, Cin, H, W = x.shape
    Cout = conv_w.shape[0]
    Ho, Wo = H // s, W // s
    # Match PyTorch strided-conv semantics when H/W are not multiples of s.
    x = x[:, :, :Ho * s, :Wo * s]

    K = Cin * s * s
    Mn = Ho * Wo
    Mn_pad = _round_up(Mn, 128)
    dtype = x.dtype
    itemsize = jnp.dtype(dtype).itemsize

    # --- space-to-depth patch extraction ------------------------------------
    # (N,Cin,Ho,s,Wo,s) -> (N,Cin,kh,kw,Ho,Wo) -> (N, K, Mn_pad)
    # allow_input_fusion lets XLA fuse this producer chain into the kernel's
    # input DMA instead of materializing an extra HBM copy of the input.
    xp = x.reshape(N, Cin, Ho, s, Wo, s)
    xt = jnp.transpose(xp, (0, 1, 3, 5, 2, 4)).reshape(N, K, Mn).astype(dtype)
    if Mn_pad != Mn:
        xt = jnp.pad(xt, ((0, 0), (0, 0), (0, Mn_pad - Mn)))

    # --- BN folded into a per-channel f32 affine applied in the epilogue ----
    gamma32 = bn_gamma.astype(jnp.float32)
    var32 = bn_var.astype(jnp.float32)
    scale = (gamma32 / jnp.sqrt(var32 + eps)).reshape(Cout, 1)
    shift = ((conv_b.astype(jnp.float32) - bn_mean.astype(jnp.float32))
             * scale[:, 0] + bn_beta.astype(jnp.float32)).reshape(Cout, 1)
    # PyTorch conv weight (Cout, Cin, kh, kw) flattens to the same (ci,kh,kw)
    # K ordering as the patches: no transpose needed, and no scale folding
    # (keeps bf16 weights un-quantized; scale applied in f32 epilogue).
    wm = conv_w.reshape(Cout, K).astype(dtype)

    # --- tiling / grid -------------------------------------------------------
    budget = _vmem_budget_bytes()
    tile_k, tile_m = _plan_tiles(K, Mn_pad, Cout, itemsize, budget, N)
    nk = pl.cdiv(K, tile_k)
    grid = (N, Mn_pad // tile_m, nk)

    cost = pl.CostEstimate(
        flops=2 * N * Mn_pad * K * Cout,
        transcendentals=0,
        bytes_accessed=(N * K * Mn_pad + Cout * K) * itemsize
        + 2 * Cout * 4 + N * Cout * Mn_pad * itemsize,
    )

    cp_kwargs = dict(
        dimension_semantics=("parallel", "parallel", "arbitrary"),
        vmem_limit_bytes=budget,
    )
    try:
        compiler_params = pltpu.CompilerParams(
            allow_input_fusion=[True, False, False, False], **cp_kwargs)
    except TypeError:  # older jax without allow_input_fusion
        compiler_params = pltpu.CompilerParams(**cp_kwargs)

    out = pl.pallas_call(
        _downsample_kernel,
        out_shape=jax.ShapeDtypeStruct((N, Cout, Mn_pad), dtype),
        grid=grid,
        in_specs=[
            pl.BlockSpec((1, tile_k, tile_m), lambda n, i, k: (n, k, i)),
            pl.BlockSpec((Cout, tile_k), lambda n, i, k: (0, k)),
            pl.BlockSpec((Cout, 1), lambda n, i, k: (0, 0)),
            pl.BlockSpec((Cout, 1), lambda n, i, k: (0, 0)),
        ],
        out_specs=pl.BlockSpec((1, Cout, tile_m), lambda n, i, k: (n, 0, i)),
        scratch_shapes=[pltpu.VMEM((Cout, tile_m), jnp.float32)],
        compiler_params=compiler_params,
        cost_estimate=cost,
    )(xt, wm, scale, shift)

    # --- free reshape straight to NCHW (slice off the Mn padding) -----------
    return out[:, :, :Mn].reshape(N, Cout, Ho, Wo)


def _reference(x, conv_w, conv_b, bn_gamma, bn_beta, bn_mean, bn_var,
               scale_factor=2, eps=1e-5):
    # Pure-JAX reference: conv (stride=k=s) + inference BN + ReLU.
    y = jax.lax.conv_general_dilated(
        x, conv_w, window_strides=(scale_factor, scale_factor),
        padding="VALID",
        dimension_numbers=("NCHW", "OIHW", "NCHW"),
        precision=jax.lax.Precision.HIGHEST)
    y = y + conv_b[None, :, None, None]
    scale = bn_gamma / jnp.sqrt(bn_var + eps)
    y = (y - bn_mean[None, :, None, None]) * scale[None, :, None, None] \
        + bn_beta[None, :, None, None]
    return jnp.maximum(y, 0.0)


if __name__ == "__main__":
    key = jax.random.PRNGKey(0)
    N, Cin, H, W = 2, 4, 16, 16
    Cout, sf = 8, 2

    k1, k2, k3, k4, k5, k6, k7 = jax.random.split(key, 7)
    x = jax.random.normal(k1, (N, Cin, H, W), dtype=jnp.float32)
    conv_w = jax.random.normal(k2, (Cout, Cin, sf, sf), dtype=jnp.float32) * 0.1
    conv_b = jax.random.normal(k3, (Cout,), dtype=jnp.float32) * 0.1
    bn_gamma = 1.0 + 0.1 * jax.random.normal(k4, (Cout,), dtype=jnp.float32)
    bn_beta = 0.1 * jax.random.normal(k5, (Cout,), dtype=jnp.float32)
    bn_mean = 0.05 * jax.random.normal(k6, (Cout,), dtype=jnp.float32)
    bn_var = jnp.abs(1.0 + 0.1 * jax.random.normal(k7, (Cout,), dtype=jnp.float32))

    # ---- f32 path ----------------------------------------------------------
    out = downsample_x(x, conv_w, conv_b, bn_gamma, bn_beta, bn_mean, bn_var,
                       scale_factor=sf)
    out = jax.block_until_ready(out)
    ref = _reference(x, conv_w, conv_b, bn_gamma, bn_beta, bn_mean, bn_var,
                     scale_factor=sf)
    assert out.shape == (N, Cout, H // sf, W // sf)
    assert jnp.allclose(out, ref, atol=1e-3, rtol=1e-3), \
        float(jnp.max(jnp.abs(out - ref)))

    # ---- bf16 MXU path (f32 epilogue keeps the BN affine in full precision) -
    x_bf = x.astype(jnp.bfloat16)
    w_bf = conv_w.astype(jnp.bfloat16)
    out_bf = downsample_x(x_bf, w_bf, conv_b, bn_gamma, bn_beta, bn_mean,
                          bn_var, scale_factor=sf)
    out_bf = jax.block_until_ready(out_bf)
    ref_bf = _reference(x_bf.astype(jnp.float32), w_bf.astype(jnp.float32),
                        conv_b, bn_gamma, bn_beta, bn_mean, bn_var,
                        scale_factor=sf)
    err = float(jnp.max(jnp.abs(out_bf.astype(jnp.float32) - ref_bf)))
    assert jnp.allclose(out_bf.astype(jnp.float32), ref_bf,
                        atol=2e-2, rtol=2e-2), err

    print("KERNEL_OK")
</pallas_src>

<mosaic_0001>
module attributes {stable_mosaic.version = 11 : i64} {
  func.func @_downsample_kernel(%arg0: i32, %arg1: i32, %arg2: i32, %arg3: memref<1x16x128xf32, #tpu.memory_space<vmem>>, %arg4: memref<8x16xf32, #tpu.memory_space<vmem>>, %arg5: memref<8x1xf32, #tpu.memory_space<vmem>>, %arg6: memref<8x1xf32, #tpu.memory_space<vmem>>, %arg7: memref<1x8x128xf32, #tpu.memory_space<vmem>>, %arg8: memref<8x128xf32, #tpu.memory_space<vmem>>) attributes {dimension_semantics = [#tpu.dimension_semantics<parallel>, #tpu.dimension_semantics<parallel>, #tpu.dimension_semantics<arbitrary>], iteration_bounds = array<i64: 2, 1, 1>, scalar_prefetch = 0 : i64, scratch_operands = 1 : i64, tpu.core_type = #tpu.core_type<tc>, window_params = [{transform_indices = @transform_0, window_bounds = array<i64: 1, 16, 128>}, {transform_indices = @transform_1, window_bounds = array<i64: 8, 16>}, {pipeline_mode = #tpu.pipeline_mode<synchronous>, transform_indices = @transform_2, window_bounds = array<i64: 8, 1>}, {pipeline_mode = #tpu.pipeline_mode<synchronous>, transform_indices = @transform_3, window_bounds = array<i64: 8, 1>}, {transform_indices = @transform_4, window_bounds = array<i64: 1, 8, 128>}]} {
    %c0_i32 = arith.constant 0 : i32
    %0 = arith.cmpi eq, %arg2, %c0_i32 : i32
    %1 = arith.extui %0 : i1 to i32
    %c0_i32_0 = arith.constant 0 : i32
    %2 = arith.cmpi ne, %1, %c0_i32_0 : i32
    scf.if %2 {
      %cst_11 = arith.constant 0.000000e+00 : f32
      %13 = vector.broadcast %cst_11 : f32 to vector<8x128xf32>
      %c0_12 = arith.constant 0 : index
      %c0_13 = arith.constant 0 : index
      %14 = vector.load %arg8[%c0_12, %c0_13] : memref<8x128xf32, #tpu.memory_space<vmem>>, vector<8x128xf32>
      tpu.vector_store %arg8[%c0_12, %c0_13], %13 {strides = array<i32>} : memref<8x128xf32, #tpu.memory_space<vmem>>, vector<8x128xf32>,
    } else {
    }
    %c0 = arith.constant 0 : index
    %c0_1 = arith.constant 0 : index
    %3 = vector.load %arg8[%c0, %c0_1] : memref<8x128xf32, #tpu.memory_space<vmem>>, vector<8x128xf32>
    %c0_2 = arith.constant 0 : index
    %c0_3 = arith.constant 0 : index
    %4 = vector.load %arg4[%c0_2, %c0_3] : memref<8x16xf32, #tpu.memory_space<vmem>>, vector<8x16xf32>
    %c0_4 = arith.constant 0 : index
    %c0_5 = arith.constant 0 : index
    %c0_6 = arith.constant 0 : index
    %5 = vector.load %arg3[%c0_4, %c0_5, %c0_6] : memref<1x16x128xf32, #tpu.memory_space<vmem>>, vector<1x16x128xf32>
    %6 = vector.shape_cast %5 : vector<1x16x128xf32> to vector<16x128xf32>
    %cst = arith.constant dense<0.000000e+00> : vector<8x128xf32>
    %7 = tpu.matmul %4, %6, %cst {dimension_numbers = #tpu.dot_dimension_numbers<[1], [0], [0], [1], [0, 0, 1, 1], [], []>} : vector<8x16xf32>, vector<16x128xf32>, vector<8x128xf32> -> vector<8x128xf32>
    %8 = arith.addf %3, %7 : vector<8x128xf32>
    %c0_7 = arith.constant 0 : index
    %c0_8 = arith.constant 0 : index
    %9 = vector.load %arg8[%c0_7, %c0_8] : memref<8x128xf32, #tpu.memory_space<vmem>>, vector<8x128xf32>
    tpu.vector_store %arg8[%c0_7, %c0_8], %8 {strides = array<i32>} : memref<8x128xf32, #tpu.memory_space<vmem>>, vector<8x128xf32>,
    %c0_i32_9 = arith.constant 0 : i32
    %10 = arith.cmpi eq, %arg2, %c0_i32_9 : i32
    %11 = arith.extui %10 : i1 to i32
    %c0_i32_10 = arith.constant 0 : i32
    %12 = arith.cmpi ne, %11, %c0_i32_10 : i32
    scf.if %12 {
      %c0_11 = arith.constant 0 : index
      %c0_12 = arith.constant 0 : index
      %13 = vector.load %arg8[%c0_11, %c0_12] : memref<8x128xf32, #tpu.memory_space<vmem>>, vector<8x128xf32>
      %c0_13 = arith.constant 0 : index
      %c0_14 = arith.constant 0 : index
      %14 = vector.load %arg5[%c0_13, %c0_14] : memref<8x1xf32, #tpu.memory_space<vmem>>, vector<8x1xf32>
      %15 = vector.broadcast %14 : vector<8x1xf32> to vector<8x128xf32>
      %16 = arith.mulf %13, %15 : vector<8x128xf32>
      %c0_15 = arith.constant 0 : index
      %c0_16 = arith.constant 0 : index
      %17 = vector.load %arg6[%c0_15, %c0_16] : memref<8x1xf32, #tpu.memory_space<vmem>>, vector<8x1xf32>
      %18 = vector.broadcast %17 : vector<8x1xf32> to vector<8x128xf32>
      %19 = arith.addf %16, %18 : vector<8x128xf32>
      %cst_17 = arith.constant 0.000000e+00 : f32
      %20 = vector.broadcast %cst_17 : f32 to vector<8x128xf32>
      %21 = arith.maximumf %19, %20 : vector<8x128xf32>
      %c0_18 = arith.constant 0 : index
      %c0_19 = arith.constant 0 : index
      %c0_20 = arith.constant 0 : index
      %22 = vector.load %arg7[%c0_18, %c0_19, %c0_20] : memref<1x8x128xf32, #tpu.memory_space<vmem>>, vector<1x8x128xf32>
      %23 = vector.shape_cast %22 : vector<1x8x128xf32> to vector<8x128xf32>
      %24 = vector.shape_cast %21 : vector<8x128xf32> to vector<1x8x128xf32>
      tpu.vector_store %arg7[%c0_18, %c0_19, %c0_20], %24 {strides = array<i32>} : memref<1x8x128xf32, #tpu.memory_space<vmem>>, vector<1x8x128xf32>,
    } else {
    }
    return
  }
  func.func @transform_0(%arg0: i32, %arg1: i32, %arg2: i32) -> (i32, i32, i32) {
    %c0_i32 = arith.constant 0 : i32
    return %arg0, %arg2, %arg1 : i32, i32, i32
  }
  func.func @transform_1(%arg0: i32, %arg1: i32, %arg2: i32) -> (i32, i32) {
    %c0_i32 = arith.constant 0 : i32
    %c0_i32_0 = arith.constant 0 : i32
    return %c0_i32, %arg2 : i32, i32
  }
  func.func @transform_2(%arg0: i32, %arg1: i32, %arg2: i32) -> (i32, i32) {
    %c0_i32 = arith.constant 0 : i32
    %c0_i32_0 = arith.constant 0 : i32
    %c0_i32_1 = arith.constant 0 : i32
    return %c0_i32, %c0_i32_0 : i32, i32
  }
  func.func @transform_3(%arg0: i32, %arg1: i32, %arg2: i32) -> (i32, i32) {
    %c0_i32 = arith.constant 0 : i32
    %c0_i32_0 = arith.constant 0 : i32
    %c0_i32_1 = arith.constant 0 : i32
    return %c0_i32, %c0_i32_0 : i32, i32
  }
  func.func @transform_4(%arg0: i32, %arg1: i32, %arg2: i32) -> (i32, i32, i32) {
    %c0_i32 = arith.constant 0 : i32
    %c0_i32_0 = arith.constant 0 : i32
    return %arg0, %c0_i32, %arg1 : i32, i32, i32
  }
}

</mosaic_0001>

<llo_original>
// kernel: downsample_x.2
$region0: #{downsample_x.2}
  #allocation0 [shape = 'u32[]', space=smem, size = 0x4, offset = 0x4, fixed_abs, tag = 'smem constant byte address 0x4 - core index']
  #allocation1 [shape = 'u32[144,128]{1,0:T(1,128)}', space=vmem, size = 0x12000, scoped, tag = 'internal scratch']
  #allocation2 [shape = 'f32[8,128]{1,0:T(8,128)}', space=vmem, size = 0x1000, scoped, tag = 'scratch operand']
  #allocation3 [shape = 'u32[2048]{0}', space=vmem, size = 0x2000, scoped, tag = 'scoped memory for downsample_x.2']
  #allocation4 [shape = 'u32[2048]{0}', space=vmem, size = 0x2000, scoped, tag = 'scoped memory for downsample_x.2']
  #allocation5 [shape = 'u32[2048]{0}', space=vmem, size = 0x2000, scoped, tag = 'scoped memory for downsample_x.2']
  #allocation6 [shape = 'u32[2048]{0}', space=vmem, size = 0x2000, scoped, tag = 'scoped memory for downsample_x.2']
  #allocation7 [shape = 'u32[2048]{0}', space=vmem, size = 0x2000, scoped, tag = 'scoped memory for downsample_x.2']
  %s0 = inlined_call_operand.vmem [shape: f32[8,16], index: 0, kind: input, shape index: {}]
  %s1 = inlined_call_operand.vmem [shape: f32[8,1], index: 1, kind: input, shape index: {}]
  %s2 = inlined_call_operand.vmem [shape: f32[8,1], index: 2, kind: input, shape index: {}]
  %s3 = inlined_call_operand.vmem [shape: f32[2,16,64], index: 3, kind: input, shape index: {}]
  %s4 = inlined_call_operand.<no memory space> [shape: f32[], index: 4, kind: input, shape index: {}]
  %s5 = inlined_call_operand.vmem [shape: f32[2,8,128], index: 5, kind: output, shape index: {}]
  %s6 = sld [smem:[#allocation0]]
  $region57: #{downsample_x.2} parent=0
    _
  %s8 = ssub.s32 1, %s6
  %s9 = scalar_select 0, %s8, %s6
  %v10 = vstv %s4
  loop: start=0, step=1, limit=4
  $region2: #{downsample_x.2} parent=0 // loop_pre_header
    _
  $region3: #{downsample_x.2} parent=0 // loop_header
    %s12 = sphi 0, %s16
    %p13 = scmp.ge.s32.totalorder %s12, 4
    %s19 = sphi 0, %s38
    %s20 = sphi 0, %s34
    %s21 = sphi 0, %s30
    %s22 = sphi 0, %s19
    %s23 = sphi 0, %s20
    %s24 = sphi 0, %s21
    %s25 = sphi 0, %s22
    %s26 = sphi 0, %s23
    %s27 = sphi 0, %s24
    %s45 = sphi 0, %s47
    %s48 = sphi 0, %s45
    %s49 = sphi 0, %s48
    %s65 = sphi 0, %s49
    %s71 = sphi 0, %s73
    %s74 = sphi 0, %s71
    %s75 = sphi 0, %s74
    %s91 = sphi 0, %s75
    %s95 = sphi 0, %s95
    %s97 = sphi 0, %s95
    %s98 = sphi 0, %s97
    %s112 = sphi 0, %s98
    %s116 = sphi 0, %s116
    %s118 = sphi 0, %s116
    %s119 = sphi 0, %s118
    %s133 = sphi 0, %s119
    %s141 = sphi 0, %s143
    %s144 = sphi 0, %s141
    %s145 = sphi 0, %s144
    %s161 = sphi 0, %s145
  $region4: #{downsample_x.2} parent=0 // loop_header_branch
    %15 = sbr.rel (%p13) target = $region8
  $region5: #{downsample_x.2} parent=0 // loop_body
    %s17 = ssub.s32 %s12, 1
    %s18 = ssub.s32 %s12, 2
    %s28 = sadd.s32 1, %s21
    %p29 = scmp.ge.s32.totalorder %s28, 1
    %s30 = scalar_select %p29, 0, %s28
    %s31 = sadd.s32 1, %s20
    %s32 = scalar_select %p29, %s31, %s20
    %p33 = scmp.ge.s32.totalorder %s32, 1
    %s34 = scalar_select %p33, 0, %s32
    %s35 = sadd.s32 1, %s19
    %s36 = scalar_select %p33, %s35, %s19
    %p37 = scmp.ge.s32.totalorder %s36, 2
    %s38 = scalar_select %p37, 0, %s36
    %s39 = ssub.s32 %s19, %s38
    %s40 = ssub.s32 %s21, %s30
    %s41 = sor.u32 %s39, %s40
    %s42 = ssub.s32 %s20, %s34
    %s43 = sor.u32 %s41, %s42
    %p44 = scmp.eq.s32.totalorder %s43, 0
    %s46 = sadd.s32 %s45, 1
    %s47 = scalar_select %p44, %s45, %s46
    %p50 = pneg %p44
    %p51 = scmp.eq.s32.totalorder %s12, 1
    %p52 = por %p50, %p51
    %p53 = scmp.ne.s32.totalorder %s45, %s48
    %p54 = scmp.eq.s32.totalorder %s12, 0
    %p55 = por %p53, %p54
    %p56 = scmp.ne.s32.totalorder %s45, %s48
    %p57 = scmp.eq.s32.totalorder %s17, 1
    %p58 = por %p56, %p57
    %p59 = scmp.ne.s32.totalorder %s48, %s49
    %p60 = scmp.eq.s32.totalorder %s17, 0
    %p61 = por %p59, %p60
    %p62 = scmp.ne.s32.totalorder %s48, %s49
    %p63 = scmp.eq.s32.totalorder %s18, 1
    %p64 = por %p62, %p63
    %p66 = scmp.ne.s32.totalorder %s49, %s65
    %p67 = scmp.eq.s32.totalorder %s18, 0
    %p68 = por %p66, %p67
    %s69 = ssub.s32 %s21, %s30
    %p70 = scmp.eq.s32.totalorder %s69, 0
    %s72 = sadd.s32 %s71, 1
    %s73 = scalar_select %p70, %s71, %s72
    %p76 = pneg %p70
    %p77 = scmp.eq.s32.totalorder %s12, 1
    %p78 = por %p76, %p77
    %p79 = scmp.ne.s32.totalorder %s71, %s74
    %p80 = scmp.eq.s32.totalorder %s12, 0
    %p81 = por %p79, %p80
    %p82 = scmp.ne.s32.totalorder %s71, %s74
    %p83 = scmp.eq.s32.totalorder %s17, 1
    %p84 = por %p82, %p83
    %p85 = scmp.ne.s32.totalorder %s74, %s75
    %p86 = scmp.eq.s32.totalorder %s17, 0
    %p87 = por %p85, %p86
    %p88 = scmp.ne.s32.totalorder %s74, %s75
    %p89 = scmp.eq.s32.totalorder %s18, 1
    %p90 = por %p88, %p89
    %p92 = scmp.ne.s32.totalorder %s75, %s91
    %p93 = scmp.eq.s32.totalorder %s18, 0
    %p94 = por %p92, %p93
    %s96 = sadd.s32 %s95, 1
    %p99 = scmp.eq.s32.totalorder %s12, 1
    %p100 = scmp.ne.s32.totalorder %s95, %s97
    %p101 = scmp.eq.s32.totalorder %s12, 0
    %p102 = por %p100, %p101
    %p103 = scmp.ne.s32.totalorder %s95, %s97
    %p104 = scmp.eq.s32.totalorder %s17, 1
    %p105 = por %p103, %p104
    %p106 = scmp.ne.s32.totalorder %s97, %s98
    %p107 = scmp.eq.s32.totalorder %s17, 0
    %p108 = por %p106, %p107
    %p109 = scmp.ne.s32.totalorder %s97, %s98
    %p110 = scmp.eq.s32.totalorder %s18, 1
    %p111 = por %p109, %p110
    %p113 = scmp.ne.s32.totalorder %s98, %s112
    %p114 = scmp.eq.s32.totalorder %s18, 0
    %p115 = por %p113, %p114
    %s117 = sadd.s32 %s116, 1
    %p120 = scmp.eq.s32.totalorder %s12, 1
    %p121 = scmp.ne.s32.totalorder %s116, %s118
    %p122 = scmp.eq.s32.totalorder %s12, 0
    %p123 = por %p121, %p122
    %p124 = scmp.ne.s32.totalorder %s116, %s118
    %p125 = scmp.eq.s32.totalorder %s17, 1
    %p126 = por %p124, %p125
    %p127 = scmp.ne.s32.totalorder %s118, %s119
    %p128 = scmp.eq.s32.totalorder %s17, 0
    %p129 = por %p127, %p128
    %p130 = scmp.ne.s32.totalorder %s118, %s119
    %p131 = scmp.eq.s32.totalorder %s18, 1
    %p132 = por %p130, %p131
    %p134 = scmp.ne.s32.totalorder %s119, %s133
    %p135 = scmp.eq.s32.totalorder %s18, 0
    %p136 = por %p134, %p135
    %s137 = ssub.s32 %s19, %s38
    %s138 = ssub.s32 %s20, %s34
    %s139 = sor.u32 %s137, %s138
    %p140 = scmp.eq.s32.totalorder %s139, 0
    %s142 = sadd.s32 %s141, 1
    %s143 = scalar_select %p140, %s141, %s142
    %p146 = pneg %p140
    %p147 = scmp.eq.s32.totalorder %s12, 1
    %p148 = por %p146, %p147
    %p149 = scmp.ne.s32.totalorder %s141, %s144
    %p150 = scmp.eq.s32.totalorder %s12, 0
    %p151 = por %p149, %p150
    %p152 = scmp.ne.s32.totalorder %s141, %s144
    %p153 = scmp.eq.s32.totalorder %s17, 1
    %p154 = por %p152, %p153
    %p155 = scmp.ne.s32.totalorder %s144, %s145
    %p156 = scmp.eq.s32.totalorder %s17, 0
    %p157 = por %p155, %p156
    %p158 = scmp.ne.s32.totalorder %s144, %s145
    %p159 = scmp.eq.s32.totalorder %s18, 1
    %p160 = por %p158, %p159
    %p162 = scmp.ne.s32.totalorder %s145, %s161
    %p163 = scmp.eq.s32.totalorder %s18, 0
    %p164 = por %p162, %p163
    %p165 = scmp.le.s32.totalorder 1, %s12
    %p166 = scmp.lt.s32.totalorder %s12, 3
    %p167 = pnand %p165, %p166
    %p168 = pneg %p167
    // Predicated region
    $region9: #{downsample_x.2} parent=5 // pred_check
      _
    $region10: #{downsample_x.2} parent=5 // pred_check_branch
      %170 = sbr.rel (%p167) target = $region12
    $region11: #{downsample_x.2} parent=5 // pred_region
      %s171 = ssub.s32 %s12, 1
      // Predicated region
      $region13: #{downsample_x.2} parent=11 // pred_check
        %p172 = pneg %p87
      $region14: #{downsample_x.2} parent=11 // pred_check_branch
        %174 = sbr.rel (%p172) target = $region16
      $region15: #{downsample_x.2} parent=11 // pred_region
        %p175 = scmp.lt.s32.totalorder %s24, 0
        %s176 = scalar_select %p175, %s24, 0
        %s177 = smul.addr %s176, 8
        %s178 = scalar_lea.vmem %s0, %s177
      $region16: #{downsample_x.2} parent=11 // pred_fallthru
        _
      // Predicated region
      $region17: #{downsample_x.2} parent=11 // pred_check
        %p179 = pneg %p108
      $region18: #{downsample_x.2} parent=11 // pred_check_branch
        %181 = sbr.rel (%p179) target = $region20
      $region19: #{downsample_x.2} parent=11 // pred_region
        _
      $region20: #{downsample_x.2} parent=11 // pred_fallthru
        _
      // Predicated region
      $region21: #{downsample_x.2} parent=11 // pred_check
        %p182 = pneg %p129
      $region22: #{downsample_x.2} parent=11 // pred_check_branch
        %184 = sbr.rel (%p182) target = $region24
      $region23: #{downsample_x.2} parent=11 // pred_region
        _
      $region24: #{downsample_x.2} parent=11 // pred_fallthru
        _
    $region12: #{downsample_x.2} parent=5 // pred_fallthru
      _
    %p185 = scmp.lt.s32.totalorder %s12, 2
    // Predicated region
    $region25: #{downsample_x.2} parent=5 // pred_check
      %p186 = pneg %p185
    $region26: #{downsample_x.2} parent=5 // pred_check_branch
      %188 = sbr.rel (%p186) target = $region28
    $region27: #{downsample_x.2} parent=5 // pred_region
      // Predicated region
      $region29: #{downsample_x.2} parent=27 // pred_check
        %p189 = pneg %p55
      $region30: #{downsample_x.2} parent=27 // pred_check_branch
        %191 = sbr.rel (%p189) target = $region32
      $region31: #{downsample_x.2} parent=27 // pred_region
        %s192 = smul.u32 2, %s21
        %s193 = ssub.s32 1, %s20
        %s194 = smul.u32 256, %s193
        %p195 = scmp.lt.s32.totalorder %s19, 1
        %s196 = scalar_select %p195, %s19, 1
        %p197 = scmp.lt.s32.totalorder %s192, 1
        %s198 = scalar_select %p197, %s192, 1
        %p199 = scmp.lt.s32.totalorder %s20, 0
        %s200 = scalar_select %p199, %s20, 0
        %s201 = sadd.s32 %s200, %s198
        %s202 = smul.addr %s196, 2
        %s203 = sadd.s32 %s201, %s202
        %s204 = smul.addr %s203, 8
        %s205 = scalar_lea.vmem %s3, %s204
        %s206 = smul.u32 2, %s21
        %s207 = ssub.s32 1, %s20
        %s208 = smul.u32 256, %s207
      $region32: #{downsample_x.2} parent=27 // pred_fallthru
        _
    $region28: #{downsample_x.2} parent=5 // pred_fallthru
      _
    %p209 = scmp.le.s32.totalorder 1, %s12
    %p210 = scmp.lt.s32.totalorder %s12, 3
    %p211 = pnand %p209, %p210
    %p212 = pneg %p211
    // Predicated region
    $region33: #{downsample_x.2} parent=5 // pred_check
      _
    $region34: #{downsample_x.2} parent=5 // pred_check_branch
      %214 = sbr.rel (%p211) target = $region36
    $region35: #{downsample_x.2} parent=5 // pred_region
      #allocation8 [shape = 'u8[8192]{0}', space=vmem, size = 0x2000, dematerialized = true, scoped, tag = 'FusionAdapter Buffer %fusion.1 = f32[2,16,128]{2,1,0:T(8,128)} fusion(%param_3.1, %param_4), kind=kLoop, calls=%fused_computation.1.clone, metadata={op_name="jit(downsample_x)/jit(_pad)/pad" stack_frame_id=9}']
      %s215 = ssub.s32 %s12, 1
      %s216 = smul.u32 2, %s24
      %s217 = ssub.s32 1, %s23
      %s218 = smul.u32 256, %s217
      %p219 = scmp.lt.s32.totalorder %s22, 1
      %s220 = scalar_select %p219, %s22, 1
      %p221 = scmp.lt.s32.totalorder %s216, 1
      %s222 = scalar_select %p221, %s216, 1
      %p223 = scmp.lt.s32.totalorder %s23, 0
      %s224 = scalar_select %p223, %s23, 0
      %s225 = sadd.s32 %s224, %s222
      %s226 = smul.addr %s220, 2
      %s227 = sadd.s32 %s225, %s226
      %s228 = smul.addr %s227, 8
      %s229 = scalar_lea.vmem %s3, %s228
      %p230 = pneg %p61
      %p231 = pneg %p58
      %p232 = scmp.lt.s32.totalorder %s24, 0
      %s233 = scalar_select %p232, %s24, 0
      %s234 = smul.addr %s233, 8
      %s235 = scalar_lea.vmem %s0, %s234
      %p236 = pneg %p87
      %p237 = pneg %p84
      %p238 = pneg %p108
      %p239 = pneg %p105
      %p240 = pneg %p129
      %p241 = pneg %p126
      %p242 = pneg %p157
      %p243 = pneg %p154
      %p244 = scmp.lt.s32.totalorder %s22, 1
      %s245 = scalar_select %p244, %s22, 1
      %p246 = scmp.lt.s32.totalorder %s23, 0
      %s247 = scalar_select %p246, %s23, 0
      %s248 = sadd.s32 %s247, %s245
      %s249 = smul.addr %s248, 8
      %s250 = scalar_lea.vmem %s5, %s249
      %s251 = smul.u32 2, %s24
      %s252 = ssub.s32 1, %s23
      %s253 = smul.u32 256, %s252
      %p254 = scmp.lt.s32.totalorder %s22, 1
      %s255 = scalar_select %p254, %s22, 1
      %p256 = scmp.lt.s32.totalorder %s251, 1
      %s257 = scalar_select %p256, %s251, 1
      %p258 = scmp.lt.s32.totalorder %s23, 0
      %s259 = scalar_select %p258, %s23, 0
      %s260 = sadd.s32 %s259, %s257
      %s261 = smul.addr %s255, 2
      %s262 = sadd.s32 %s260, %s261
      %s263 = smul.addr %s262, 8
      %s264 = scalar_lea.vmem %s3, %s263
      %s265 = smul.u32 2, %s24
      %s266 = ssub.s32 1, %s23
      %s267 = smul.u32 256, %s266
      %p268 = scmp.lt.s32.totalorder %s24, 0
      %s269 = scalar_select %p268, %s24, 0
      %s270 = smul.addr %s269, 8
      %s271 = scalar_lea.vmem %s0, %s270
      %p272 = scmp.lt.s32.totalorder %s22, 1
      %s273 = scalar_select %p272, %s22, 1
      %p274 = scmp.lt.s32.totalorder %s23, 0
      %s275 = scalar_select %p274, %s23, 0
      %s276 = sadd.s32 %s275, %s273
      %s277 = smul.addr %s276, 8
      %s278 = scalar_lea.vmem %s5, %s277
      %s279 = ssub.s32 0, %s23
      %p280 = scmp.lt.s32.totalorder %s279, 0
      %s281 = scalar_select %p280, 0, 255
      %v282 = vld [vmem:[%s264] sm:%s281]
      %s283 = ssub.s32 0, %s23
      %v284 = vstv %s283
      %vm285 = vcmp.lt.s32.totalorder %v284, 0
      %v286 = vsel %vm285, %v10, %v282
      %s287 = smul.addr %s23, 128
      %v288 = vlaneseq
      %v289 = vand.u32 %v288, 127
      %v290 = vstv %s287
      %v291 = vadd.s32 %v289, %v290
      %vm292 = vcmp.lt.s32.totalorder %v291, 64
      %v293 = vsel %vm292, %v286, %v10
      %295 = vst [vmem:[#allocation8] sm:$0xff] %v293
      %s296 = scalar_lea.vmem %s264, 8
      %s297 = ssub.s32 0, %s23
      %p298 = scmp.lt.s32.totalorder %s297, 0
      %s299 = scalar_select %p298, 0, 255
      %v300 = vld [vmem:[%s296] sm:%s299]
      %s301 = ssub.s32 0, %s23
      %v302 = vstv %s301
      %vm303 = vcmp.lt.s32.totalorder %v302, 0
      %v304 = vsel %vm303, %v10, %v300
      %s305 = smul.addr %s23, 128
      %v306 = vlaneseq
      %v307 = vand.u32 %v306, 127
      %v308 = vstv %s305
      %v309 = vadd.s32 %v307, %v308
      %vm310 = vcmp.lt.s32.totalorder %v309, 64
      %v311 = vsel %vm310, %v304, %v10
      %s312 = scalar_lea.vmem [#allocation8], 8
      %314 = vst [vmem:[%s312] sm:$0xff] %v311
      %p315 = scmp.eq.s32.totalorder %s24, 0
      // Predicated region
      $region37: #{downsample_x.2} parent=35 // pred_check
        %p316 = pneg %p315
      $region38: #{downsample_x.2} parent=35 // pred_check_branch
        %318 = sbr.rel (%p316) target = $region40
      $region39: #{downsample_x.2} parent=35 // pred_region
        %319 = vst [vmem:[#allocation2] sm:$0xff] 0.0
      $region40: #{downsample_x.2} parent=35 // pred_fallthru
        _
      %v320 = vld [vmem:[#allocation2] sm:$0xff]
      %v321 = vld [vmem:[%s271] sm:$0xff]
      %v322 = vld [vmem:[#allocation8] sm:$0xff]
      %v323 = vld [vmem:[#allocation8 + $0x8] sm:$0xff]
      %vm324 = vcmask 130048
      %v326 = vsel %vm324, %v321, 0
      %328 = vmatprep.subr.mxu0 0.0
      %329 = vmatpush1.msra.mxu0 %v322
      %330 = vmatprep.subr.mxu0 0.0
      %331 = vmatpush1.msra.mxu0 %v323
      %332 = vmatprep.subr.mxu0 0.0
      %333 = vmatpush1.msra.mxu0 0.0
      %334 = vmatprep.subr.mxu0 0.0
      %335 = vmatpush1.msra.mxu0 0.0
      %336 = vmatprep.subr.mxu0 0.0
      %337 = vmatpush1.msra.mxu0 0.0
      %338 = vmatprep.subr.mxu0 0.0
      %339 = vmatpush1.msra.mxu0 0.0
      %340 = vmatprep.subr.mxu0 0.0
      %341 = vmatpush1.msra.mxu0 0.0
      %342 = vmatprep.subr.mxu0 0.0
      %343 = vmatpush1.msra.mxu0 0.0
      %344 = vmatprep.subr.mxu0 0.0
      %345 = vmatpush1.msra.mxu0 0.0
      %346 = vmatprep.subr.mxu0 0.0
      %347 = vmatpush1.msra.mxu0 0.0
      %348 = vmatprep.subr.mxu0 0.0
      %349 = vmatpush1.msra.mxu0 0.0
      %350 = vmatprep.subr.mxu0 0.0
      %351 = vmatpush1.msra.mxu0 0.0
      %352 = vmatprep.subr.mxu0 0.0
      %353 = vmatpush1.msra.mxu0 0.0
      %354 = vmatprep.subr.mxu0 0.0
      %355 = vmatpush1.msra.mxu0 0.0
      %356 = vmatprep.subr.mxu0 0.0
      %357 = vmatpush1.msra.mxu0 0.0
      %358 = vmatprep.subr.mxu0 0.0
      %359 = vmatpush1.msra.mxu0 0.0
      %360 = vmatprep.subr.mxu0 0.0
      %361 = vmatpush1.msra.mxu0 0.0
      %362 = vmatprep.subr.mxu0 0.0
      %363 = vmatpush1.msra.mxu0 0.0
      %364 = vmatprep.subr.mxu0 0.0
      %365 = vmatpush1.msra.mxu0 0.0
      %366 = vmatprep.subr.mxu0 0.0
      %367 = vmatpush1.msra.mxu0 0.0
      %368 = vmatprep.subr.mxu0 0.0
      %369 = vmatpush1.msra.mxu0 0.0
      %370 = vmatprep.subr.mxu0 0.0
      %371 = vmatpush1.msra.mxu0 0.0
      %372 = vmatprep.subr.mxu0 0.0
      %373 = vmatpush1.msra.mxu0 0.0
      %374 = vmatprep.subr.mxu0 0.0
      %375 = vmatpush1.msra.mxu0 0.0
      %376 = vmatprep.subr.mxu0 0.0
      %377 = vmatpush1.msra.mxu0 0.0
      %378 = vmatprep.subr.mxu0 0.0
      %379 = vmatpush1.msra.mxu0 0.0
      %380 = vmatprep.subr.mxu0 0.0
      %381 = vmatpush1.msra.mxu0 0.0
      %382 = vmatprep.subr.mxu0 0.0
      %383 = vmatpush1.msra.mxu0 0.0
      %384 = vmatprep.subr.mxu0 0.0
      %385 = vmatpush1.msra.mxu0 0.0
      %386 = vmatprep.subr.mxu0 0.0
      %387 = vmatpush1.msra.mxu0 0.0
      %388 = vmatprep.subr.mxu0 0.0
      %389 = vmatpush1.msra.mxu0 0.0
      %390 = vmatprep.subr.mxu0 0.0
      %391 = vmatpush1.msra.mxu0 0.0
      %392 = vmatprep.mubr.f32.mxu0 0.0
      %393 = vmatmul.mubr.f32.gmra.mrb[0].mxu0 %v326
      %v394 = vpop.f32.mrb[0].mxu0
      %v395 = vadd.f32 0.0, %v394
      %v396 = vpop.f32.mrb[0].mxu0
      %397 = vdwg.mxu0
      %v398 = vadd.f32 %v320, %v395
      %399 = vst [vmem:[#allocation2] sm:$0xff] %v398
      // Predicated region
      $region41: #{downsample_x.2} parent=35 // pred_check
        %p400 = pneg %p315
      $region42: #{downsample_x.2} parent=35 // pred_check_branch
        %402 = sbr.rel (%p400) target = $region44
      $region43: #{downsample_x.2} parent=35 // pred_region
        %v403 = vld [vmem:[#allocation2] sm:$0xff]
        %v404 = vld [vmem:[%s1] sm:$0xff]
        %406 = vset.pattern.permute.xlu0 0
        %407 = vperm.xlu0 %406, %v404
        %v408 = vpop.permute.xlu0 %407
        %v410 = vmul.f32 %v403, %v408
        %v411 = vld [vmem:[%s2] sm:$0xff]
        %413 = vset.pattern.permute.xlu0 0
        %414 = vperm.xlu0 %413, %v411
        %v415 = vpop.permute.xlu0 %414
        %v417 = vadd.f32 %v410, %v415
        %v418 = vmax.f32 %v417, 0.0
        %419 = vst [vmem:[%s278] sm:$0xff] %v418
      $region44: #{downsample_x.2} parent=35 // pred_fallthru
        _
      %p420 = scmp.lt.s32.totalorder %s22, 1
      %s421 = scalar_select %p420, %s22, 1
      %p422 = scmp.lt.s32.totalorder %s23, 0
      %s423 = scalar_select %p422, %s23, 0
      %s424 = sadd.s32 %s423, %s421
      %s425 = smul.addr %s424, 8
      %s426 = scalar_lea.vmem %s5, %s425
      // Predicated region
      $region45: #{downsample_x.2} parent=35 // pred_check
        %p427 = pneg %p154
      $region46: #{downsample_x.2} parent=35 // pred_check_branch
        %429 = sbr.rel (%p427) target = $region48
      $region47: #{downsample_x.2} parent=35 // pred_region
        _
      $region48: #{downsample_x.2} parent=35 // pred_fallthru
        _
    $region36: #{downsample_x.2} parent=5 // pred_fallthru
      _
    %p430 = scmp.le.s32.totalorder 2, %s12
    // Predicated region
    $region49: #{downsample_x.2} parent=5 // pred_check
      %p431 = pneg %p430
    $region50: #{downsample_x.2} parent=5 // pred_check_branch
      %433 = sbr.rel (%p431) target = $region52
    $region51: #{downsample_x.2} parent=5 // pred_region
      %s434 = ssub.s32 %s12, 2
      // Predicated region
      $region53: #{downsample_x.2} parent=51 // pred_check
        %p435 = pneg %p160
      $region54: #{downsample_x.2} parent=51 // pred_check_branch
        %437 = sbr.rel (%p435) target = $region56
      $region55: #{downsample_x.2} parent=51 // pred_region
        %p438 = scmp.lt.s32.totalorder %s25, 1
        %s439 = scalar_select %p438, %s25, 1
        %p440 = scmp.lt.s32.totalorder %s26, 0
        %s441 = scalar_select %p440, %s26, 0
        %s442 = sadd.s32 %s441, %s439
        %s443 = smul.addr %s442, 8
        %s444 = scalar_lea.vmem %s5, %s443
      $region56: #{downsample_x.2} parent=51 // pred_fallthru
        _
    $region52: #{downsample_x.2} parent=5 // pred_fallthru
      _
  $region6: #{downsample_x.2} parent=0 // loop_footer
    %s16 = sadd.s32 1, %s12
  $region7: #{downsample_x.2} parent=0 // loop_footer_branch
    %11 = sbr.rel target = $region3
  $region8: #{downsample_x.2} parent=0 // loop_exit
    _

</llo_original>
